<compile_context>
chip_gen: v7x
topology: tpu7x:2x2x1
jax: 0.10.0
libtpu: 0.0.40
codegen_flags: <defaults>
</compile_context>

<pallas_src>
import math

import jax
import jax.numpy as jnp
from jax.experimental import pallas as pl
from jax.experimental.pallas import tpu as pltpu


def _critic_kernel(x_ref, a_ref, w1x_ref, w1a_ref, b1_ref, w2_ref, b2_ref, o_ref):
    # fc1 as two MXU matmuls accumulated in f32 (no concat needed).
    h = jnp.dot(x_ref[...], w1x_ref[...], preferred_element_type=jnp.float32)
    h = h + jnp.dot(a_ref[...], w1a_ref[...], preferred_element_type=jnp.float32)
    h = jnp.maximum(h + b1_ref[...], 0.0)                        # [bt, H] f32

    # fc2: [1, H] x [bt, H]^T -> [1, bt] lane-dense row straight off the MXU.
    out = jax.lax.dot_general(
        w2_ref[...], h,
        dimension_numbers=(((1,), (1,)), ((), ())),
        preferred_element_type=jnp.float32)                      # [1, bt]
    o_ref[...] = out + b2_ref[0, 0]


def critic_forward(x, a, w1, b1, w2, b2, *, block_b=8192):
    """x: [B, S], a: [B, A], w1: [S+A, H], b1: [H], w2: [H, 1], b2: [1].

    Returns fc2(relu(fc1(cat([x, a])))) as [B, 1] float32.
    """
    B, S = x.shape
    A = a.shape[1]
    H = w1.shape[1]

    # Batch tile.  bt == B (single grid step) whenever B fits; otherwise keep
    # bt a multiple of 128 so the lane-dense output block and the (bt, S)
    # input blocks satisfy the (8, 128) tiling constraint.
    bt = min(block_b, B)
    if bt < B:
        bt = max(128, (bt // 128) * 128)
    grid = (pl.cdiv(B, bt),)

    # Split fc1 weights so the kernel never concatenates along the lane axis.
    w1_x = w1[:S].astype(jnp.float32)                            # [S, H]
    w1_a = w1[S:].astype(jnp.float32)                            # [A, H]
    b1_2d = b1.reshape(1, H).astype(jnp.float32)                 # [1, H]
    w2_row = w2.reshape(1, H).astype(jnp.float32)                # [1, H]
    b2_2d = b2.reshape(1, 1).astype(jnp.float32)                 # [1, 1] SMEM scalar

    flops = 2 * B * (S + A) * H + 2 * B * H
    bytes_accessed = (B * (S + A) * 4                  # x, a (f32, no convert pass)
                      + (S + A) * H * 4                # fc1 weights
                      + (2 * H + 1) * 4                # b1, w2 row, b2
                      + B * 4)                         # output

    out = pl.pallas_call(
        _critic_kernel,
        out_shape=jax.ShapeDtypeStruct((1, B), jnp.float32),     # lane-dense
        grid=grid,
        in_specs=[
            pl.BlockSpec((bt, S), lambda i: (i, 0)),             # x tile
            pl.BlockSpec((bt, A), lambda i: (i, 0)),             # a tile
            pl.BlockSpec((S, H), lambda i: (0, 0)),              # W1_x (resident)
            pl.BlockSpec((A, H), lambda i: (0, 0)),              # W1_a (resident)
            pl.BlockSpec((1, H), lambda i: (0, 0)),              # b1   (resident)
            pl.BlockSpec((1, H), lambda i: (0, 0)),              # w2 row (resident)
            pl.BlockSpec(memory_space=pltpu.MemorySpace.SMEM),   # b2 scalar
        ],
        out_specs=pl.BlockSpec((1, bt), lambda i: (0, i)),       # lane-dense row
        compiler_params=pltpu.CompilerParams(
            dimension_semantics=("parallel",),
            vmem_limit_bytes=32 * 1024 * 1024),                  # safe on v5e..v7x
        cost_estimate=pl.CostEstimate(
            flops=flops, transcendentals=0, bytes_accessed=bytes_accessed),
    )(x, a, w1_x, w1_a, b1_2d, w2_row, b2_2d)

    return out.reshape(B, 1)                                     # free, contiguous


def init_critic_params(key, state_dim, hidden_dim, action_dim):
    """Deterministic init mimicking torch.nn.Linear's default uniform init."""
    k1, k2, k3, k4 = jax.random.split(key, 4)
    in1 = state_dim + action_dim
    bound1 = 1.0 / math.sqrt(in1)
    bound2 = 1.0 / math.sqrt(hidden_dim)
    w1 = jax.random.uniform(k1, (in1, hidden_dim), jnp.float32, -bound1, bound1)
    b1 = jax.random.uniform(k2, (hidden_dim,), jnp.float32, -bound1, bound1)
    w2 = jax.random.uniform(k3, (hidden_dim, 1), jnp.float32, -bound2, bound2)
    b2 = jax.random.uniform(k4, (1,), jnp.float32, -bound2, bound2)
    return w1, b1, w2, b2


def critic_reference(x, a, w1, b1, w2, b2):
    """Pure-JAX f32 reference matching the PyTorch module's math."""
    cat = jnp.concatenate([x, a], axis=-1)
    h = jnp.maximum(jnp.dot(cat, w1) + b1, 0.0)
    return jnp.dot(h, w2) + b2


if __name__ == "__main__":
    B, STATE_DIM, ACTION_DIM, HIDDEN_DIM = 8, 16, 8, 32

    key = jax.random.PRNGKey(0)
    kx, ka, kp = jax.random.split(key, 3)
    x = jax.random.normal(kx, (B, STATE_DIM), jnp.float32)
    a = jax.random.normal(ka, (B, ACTION_DIM), jnp.float32)
    w1, b1, w2, b2 = init_critic_params(kp, STATE_DIM, HIDDEN_DIM, ACTION_DIM)

    # Small batch, single grid step (bt == B).
    out = critic_forward(x, a, w1, b1, w2, b2)
    out = jax.block_until_ready(out)
    ref = critic_reference(x, a, w1, b1, w2, b2)
    assert out.shape == (B, 1)
    assert jnp.allclose(out, ref, atol=1e-4, rtol=1e-4)

    # Larger batch, multiple grid steps (2 full tiles of 512).
    B2 = 1024
    kx2, ka2 = jax.random.split(jax.random.PRNGKey(1))
    x2 = jax.random.normal(kx2, (B2, STATE_DIM), jnp.float32)
    a2 = jax.random.normal(ka2, (B2, ACTION_DIM), jnp.float32)
    out2 = critic_forward(x2, a2, w1, b1, w2, b2, block_b=512)
    out2 = jax.block_until_ready(out2)
    ref2 = critic_reference(x2, a2, w1, b1, w2, b2)
    assert out2.shape == (B2, 1)
    assert jnp.allclose(out2, ref2, atol=1e-4, rtol=1e-4)

    # Ragged batch (partial last tile -> masked edge blocks on inputs/output).
    B3 = 1000
    kx3, ka3 = jax.random.split(jax.random.PRNGKey(2))
    x3 = jax.random.normal(kx3, (B3, STATE_DIM), jnp.float32)
    a3 = jax.random.normal(ka3, (B3, ACTION_DIM), jnp.float32)
    out3 = critic_forward(x3, a3, w1, b1, w2, b2, block_b=512)
    out3 = jax.block_until_ready(out3)
    ref3 = critic_reference(x3, a3, w1, b1, w2, b2)
    assert out3.shape == (B3, 1)
    assert jnp.allclose(out3, ref3, atol=1e-4, rtol=1e-4)

    print("KERNEL_OK")
</pallas_src>

<mosaic_0001>
module attributes {stable_mosaic.version = 11 : i64} {
  func.func @_critic_kernel(%arg0: i32, %arg1: memref<8x16xf32, #tpu.memory_space<vmem>>, %arg2: memref<8x8xf32, #tpu.memory_space<vmem>>, %arg3: memref<16x32xf32, #tpu.memory_space<vmem>>, %arg4: memref<8x32xf32, #tpu.memory_space<vmem>>, %arg5: memref<1x32xf32, #tpu.memory_space<vmem>>, %arg6: memref<1x32xf32, #tpu.memory_space<vmem>>, %arg7: memref<1x1xf32, #tpu.memory_space<smem>>, %arg8: memref<1x8xf32, #tpu.memory_space<vmem>>) attributes {dimension_semantics = [#tpu.dimension_semantics<parallel>], iteration_bounds = array<i64: 1>, scalar_prefetch = 0 : i64, scratch_operands = 0 : i64, tpu.core_type = #tpu.core_type<tc>, window_params = [{transform_indices = @transform_0, window_bounds = array<i64: 8, 16>}, {transform_indices = @transform_1, window_bounds = array<i64: 8, 8>}, {pipeline_mode = #tpu.pipeline_mode<synchronous>, transform_indices = @transform_2, window_bounds = array<i64: 16, 32>}, {pipeline_mode = #tpu.pipeline_mode<synchronous>, transform_indices = @transform_3, window_bounds = array<i64: 8, 32>}, {pipeline_mode = #tpu.pipeline_mode<synchronous>, transform_indices = @transform_4, window_bounds = array<i64: 1, 32>}, {pipeline_mode = #tpu.pipeline_mode<synchronous>, transform_indices = @transform_5, window_bounds = array<i64: 1, 32>}, {transform_indices = @transform_6, window_bounds = array<i64: 1, 1>}, {transform_indices = @transform_7, window_bounds = array<i64: 1, 8>}]} {
    %c0 = arith.constant 0 : index
    %c0_0 = arith.constant 0 : index
    %0 = vector.load %arg1[%c0, %c0_0] : memref<8x16xf32, #tpu.memory_space<vmem>>, vector<8x16xf32>
    %c0_1 = arith.constant 0 : index
    %c0_2 = arith.constant 0 : index
    %1 = vector.load %arg3[%c0_1, %c0_2] : memref<16x32xf32, #tpu.memory_space<vmem>>, vector<16x32xf32>
    %cst = arith.constant dense<0.000000e+00> : vector<8x32xf32>
    %2 = tpu.matmul %0, %1, %cst {dimension_numbers = #tpu.dot_dimension_numbers<[1], [0], [0], [1], [0, 0, 1, 1], [], []>} : vector<8x16xf32>, vector<16x32xf32>, vector<8x32xf32> -> vector<8x32xf32>
    %c0_3 = arith.constant 0 : index
    %c0_4 = arith.constant 0 : index
    %3 = vector.load %arg2[%c0_3, %c0_4] : memref<8x8xf32, #tpu.memory_space<vmem>>, vector<8x8xf32>
    %c0_5 = arith.constant 0 : index
    %c0_6 = arith.constant 0 : index
    %4 = vector.load %arg4[%c0_5, %c0_6] : memref<8x32xf32, #tpu.memory_space<vmem>>, vector<8x32xf32>
    %cst_7 = arith.constant dense<0.000000e+00> : vector<8x32xf32>
    %5 = tpu.matmul %3, %4, %cst_7 {dimension_numbers = #tpu.dot_dimension_numbers<[1], [0], [0], [1], [0, 0, 1, 1], [], []>} : vector<8x8xf32>, vector<8x32xf32>, vector<8x32xf32> -> vector<8x32xf32>
    %6 = arith.addf %2, %5 : vector<8x32xf32>
    %c0_8 = arith.constant 0 : index
    %c0_9 = arith.constant 0 : index
    %7 = vector.load %arg5[%c0_8, %c0_9] : memref<1x32xf32, #tpu.memory_space<vmem>>, vector<1x32xf32>
    %8 = vector.broadcast %7 : vector<1x32xf32> to vector<8x32xf32>
    %9 = arith.addf %6, %8 : vector<8x32xf32>
    %cst_10 = arith.constant 0.000000e+00 : f32
    %10 = vector.broadcast %cst_10 : f32 to vector<8x32xf32>
    %11 = arith.maximumf %9, %10 : vector<8x32xf32>
    %c0_11 = arith.constant 0 : index
    %c0_12 = arith.constant 0 : index
    %12 = vector.load %arg6[%c0_11, %c0_12] : memref<1x32xf32, #tpu.memory_space<vmem>>, vector<1x32xf32>
    %cst_13 = arith.constant dense<0.000000e+00> : vector<1x8xf32>
    %13 = tpu.matmul %12, %11, %cst_13 {dimension_numbers = #tpu.dot_dimension_numbers<[1], [1], [0], [0], [0, 0, 1, 0], [], []>} : vector<1x32xf32>, vector<8x32xf32>, vector<1x8xf32> -> vector<1x8xf32>
    %c0_14 = arith.constant 0 : index
    %c0_15 = arith.constant 0 : index
    %14 = memref.load %arg7[%c0_14, %c0_15] : memref<1x1xf32, #tpu.memory_space<smem>>
    %15 = vector.broadcast %14 : f32 to vector<1x8xf32>
    %16 = arith.addf %13, %15 : vector<1x8xf32>
    %c0_16 = arith.constant 0 : index
    %c0_17 = arith.constant 0 : index
    %17 = vector.load %arg8[%c0_16, %c0_17] : memref<1x8xf32, #tpu.memory_space<vmem>>, vector<1x8xf32>
    tpu.vector_store %arg8[%c0_16, %c0_17], %16 {strides = array<i32>} : memref<1x8xf32, #tpu.memory_space<vmem>>, vector<1x8xf32>,
    return
  }
  func.func @transform_0(%arg0: i32) -> (i32, i32) {
    %c0_i32 = arith.constant 0 : i32
    %c0_i32_0 = arith.constant 0 : i32
    return %arg0, %c0_i32 : i32, i32
  }
  func.func @transform_1(%arg0: i32) -> (i32, i32) {
    %c0_i32 = arith.constant 0 : i32
    %c0_i32_0 = arith.constant 0 : i32
    return %arg0, %c0_i32 : i32, i32
  }
  func.func @transform_2(%arg0: i32) -> (i32, i32) {
    %c0_i32 = arith.constant 0 : i32
    %c0_i32_0 = arith.constant 0 : i32
    %c0_i32_1 = arith.constant 0 : i32
    return %c0_i32, %c0_i32_0 : i32, i32
  }
  func.func @transform_3(%arg0: i32) -> (i32, i32) {
    %c0_i32 = arith.constant 0 : i32
    %c0_i32_0 = arith.constant 0 : i32
    %c0_i32_1 = arith.constant 0 : i32
    return %c0_i32, %c0_i32_0 : i32, i32
  }
  func.func @transform_4(%arg0: i32) -> (i32, i32) {
    %c0_i32 = arith.constant 0 : i32
    %c0_i32_0 = arith.constant 0 : i32
    %c0_i32_1 = arith.constant 0 : i32
    return %c0_i32, %c0_i32_0 : i32, i32
  }
  func.func @transform_5(%arg0: i32) -> (i32, i32) {
    %c0_i32 = arith.constant 0 : i32
    %c0_i32_0 = arith.constant 0 : i32
    %c0_i32_1 = arith.constant 0 : i32
    return %c0_i32, %c0_i32_0 : i32, i32
  }
  func.func @transform_6(%arg0: i32) -> (i32, i32) {
    %c0_i32 = arith.constant 0 : i32
    %c0_i32_0 = arith.constant 0 : i32
    %c0_i32_1 = arith.constant 0 : i32
    return %c0_i32, %c0_i32_0 : i32, i32
  }
  func.func @transform_7(%arg0: i32) -> (i32, i32) {
    %c0_i32 = arith.constant 0 : i32
    %c0_i32_0 = arith.constant 0 : i32
    return %c0_i32, %arg0 : i32, i32
  }
}

</mosaic_0001>

<llo_original>
// kernel: tpu_custom_call.1
$region0: #{tpu_custom_call.1}
  #allocation0 [shape = 'u32[]', space=smem, size = 0x4, offset = 0x4, fixed_abs, tag = 'smem constant byte address 0x4 - core index']
  #allocation1 [shape = 'u32[144,128]{1,0:T(1,128)}', space=vmem, size = 0x12000, scoped, tag = 'internal scratch']
  #allocation2 [shape = 'f32[1,1]{1,0:T(1,128)S(6)}', space=smem, size = 0x200, scoped, tag = 'scoped memory for tpu_custom_call.1']
  %s0 = inlined_call_operand.hbm [shape: f32[8,16], index: 0, kind: input, shape index: {}]
  %s1 = inlined_call_operand.hbm [shape: f32[8,8], index: 1, kind: input, shape index: {}]
  %s2 = inlined_call_operand.hbm [shape: f32[16,32], index: 2, kind: input, shape index: {}]
  %s3 = inlined_call_operand.vmem [shape: f32[8,32], index: 3, kind: input, shape index: {}]
  %s4 = inlined_call_operand.vmem [shape: f32[1,32], index: 4, kind: input, shape index: {}]
  %s5 = inlined_call_operand.vmem [shape: f32[1,32], index: 5, kind: input, shape index: {}]
  %s6 = inlined_call_operand.<no memory space> [shape: f32[1,1], index: 6, kind: input, shape index: {}]
  %s7 = inlined_call_operand.hbm [shape: f32[1,8], index: 7, kind: output, shape index: {}]
  %s8 = sld [smem:[#allocation0]]
  $region50: #{tpu_custom_call.1} parent=0
    _
  %s10 = ssub.s32 1, %s8
  %s11 = scalar_select 0, %s10, %s8
  %12 = sst [smem:[#allocation2]] %s6
  $region1: #{tpu_custom_call.1} parent=0
    #allocation3 [shape = 'u8[4096]{0}', space=vmem, size = 0x1000, scoped, tag = 'input window, operand 0, single buffered']
    #allocation4 [shape = 's32[1]{0}', space=sflag, size = 0x4, scoped, tag = 'scoped memory for tpu_custom_call.1']
    #allocation5 [shape = 's32[1]{0}', space=sflag, size = 0x4, scoped, tag = 'scoped memory for tpu_custom_call.1']
    #allocation6 [shape = 'u8[4096]{0}', space=vmem, size = 0x1000, scoped, tag = 'input window, operand 1, single buffered']
    #allocation7 [shape = 's32[1]{0}', space=sflag, size = 0x4, scoped, tag = 'scoped memory for tpu_custom_call.1']
    #allocation8 [shape = 'u8[8192]{0}', space=vmem, size = 0x2000, scoped, tag = 'input window, operand 2, single buffered']
    #allocation9 [shape = 'u8[512]{0}', space=vmem, size = 0x400, scoped, tag = 'output window, operand 0, single buffered']
    %13 = vsyncpa [#allocation4], 0
    %14 = vsyncpa [#allocation7], 0
    %15 = vsyncpa [#allocation5], 0
    // Predicated region
    $region2: #{tpu_custom_call.1} parent=1 // pred_check
      _
    $region3: #{tpu_custom_call.1} parent=1 // pred_check_branch
      %17 = sbr.rel (0) target = $region5
    $region4: #{tpu_custom_call.1} parent=1 // pred_region
      %s19 = ssub.s32 128, 128
      %20 = vsyncadd [#allocation4], %s19
      %s22 = sshll.u32 [#allocation3], 4
      %s23 = int_to_ptr.vmem [resolvable:$true] %s22
      %25 = dma.hbm_to_vmem [thread:$0]  %s0, 128, %s23, [#allocation4]
    $region5: #{tpu_custom_call.1} parent=1 // pred_fallthru
      _
    // Predicated region
    $region6: #{tpu_custom_call.1} parent=1 // pred_check
      _
    $region7: #{tpu_custom_call.1} parent=1 // pred_check_branch
      %27 = sbr.rel (0) target = $region9
    $region8: #{tpu_custom_call.1} parent=1 // pred_region
      %s29 = ssub.s32 128, 128
      %30 = vsyncadd [#allocation7], %s29
      %s32 = sshll.u32 [#allocation6], 4
      %s33 = int_to_ptr.vmem [resolvable:$true] %s32
      %35 = dma.hbm_to_vmem [thread:$0]  %s1, 128, %s33, [#allocation7]
    $region9: #{tpu_custom_call.1} parent=1 // pred_fallthru
      _
    // Predicated region
    $region10: #{tpu_custom_call.1} parent=1 // pred_check
      _
    $region11: #{tpu_custom_call.1} parent=1 // pred_check_branch
      %37 = sbr.rel (0) target = $region13
    $region12: #{tpu_custom_call.1} parent=1 // pred_region
      %s39 = ssub.s32 256, 256
      %40 = vsyncadd [#allocation7], %s39
      %s41 = sshll.u32 [#allocation8], 4
      %s42 = int_to_ptr.vmem [resolvable:$true] %s41
      %47 = dma.hbm_to_vmem [thread:$0]  %s2, 256, %s42, [#allocation7], 128, 128, 8
    $region13: #{tpu_custom_call.1} parent=1 // pred_fallthru
      _
    // Predicated region
    $region14: #{tpu_custom_call.1} parent=1 // pred_check
      _
    $region15: #{tpu_custom_call.1} parent=1 // pred_check_branch
      %49 = sbr.rel (0) target = $region17
    $region16: #{tpu_custom_call.1} parent=1 // pred_region
      _
    $region17: #{tpu_custom_call.1} parent=1 // pred_fallthru
      _
    // Predicated region
    $region18: #{tpu_custom_call.1} parent=1 // pred_check
      _
    $region19: #{tpu_custom_call.1} parent=1 // pred_check_branch
      %51 = sbr.rel (0) target = $region21
    $region20: #{tpu_custom_call.1} parent=1 // pred_region
      _
    $region21: #{tpu_custom_call.1} parent=1 // pred_fallthru
      _
    // Predicated region
    $region22: #{tpu_custom_call.1} parent=1 // pred_check
      _
    $region23: #{tpu_custom_call.1} parent=1 // pred_check_branch
      %53 = sbr.rel (0) target = $region25
    $region24: #{tpu_custom_call.1} parent=1 // pred_region
      _
    $region25: #{tpu_custom_call.1} parent=1 // pred_fallthru
      _
    // Predicated region
    $region26: #{tpu_custom_call.1} parent=1 // pred_check
      _
    $region27: #{tpu_custom_call.1} parent=1 // pred_check_branch
      %55 = sbr.rel (0) target = $region29
    $region28: #{tpu_custom_call.1} parent=1 // pred_region
      _
    $region29: #{tpu_custom_call.1} parent=1 // pred_fallthru
      _
    // Predicated region
    $region30: #{tpu_custom_call.1} parent=1 // pred_check
      _
    $region31: #{tpu_custom_call.1} parent=1 // pred_check_branch
      %57 = sbr.rel (0) target = $region33
    $region32: #{tpu_custom_call.1} parent=1 // pred_region
      %58 = dma.done [#allocation4], 128
    $region33: #{tpu_custom_call.1} parent=1 // pred_fallthru
      _
    // Predicated region
    $region34: #{tpu_custom_call.1} parent=1 // pred_check
      _
    $region35: #{tpu_custom_call.1} parent=1 // pred_check_branch
      %60 = sbr.rel (0) target = $region37
    $region36: #{tpu_custom_call.1} parent=1 // pred_region
      %61 = dma.done [#allocation7], 128
    $region37: #{tpu_custom_call.1} parent=1 // pred_fallthru
      _
    // Predicated region
    $region38: #{tpu_custom_call.1} parent=1 // pred_check
      _
    $region39: #{tpu_custom_call.1} parent=1 // pred_check_branch
      %63 = sbr.rel (0) target = $region41
    $region40: #{tpu_custom_call.1} parent=1 // pred_region
      %64 = dma.done [#allocation7], 256
    $region41: #{tpu_custom_call.1} parent=1 // pred_fallthru
      _
    %v65 = vld [vmem:[#allocation3] sm:$0xff]
    %v66 = vld [vmem:[#allocation8] sm:$0xff]
    %v67 = vld [vmem:[#allocation8 + $0x8] sm:$0xff]
    %v68 = vld [vmem:[#allocation6] sm:$0xff]
    %v69 = vld [vmem:[%s3] sm:$0xff]
    %vm70 = vcmask 64512
    %v72 = vsel %vm70, %v68, 0
    %74 = vmatprep.subr.mxu0 0.0
    %75 = vmatpush1.msra.mxu0 %v69
    %76 = vmatprep.subr.mxu0 0.0
    %77 = vmatpush1.msra.mxu0 0.0
    %78 = vmatprep.subr.mxu0 0.0
    %79 = vmatpush1.msra.mxu0 0.0
    %80 = vmatprep.subr.mxu0 0.0
    %81 = vmatpush1.msra.mxu0 0.0
    %82 = vmatprep.subr.mxu0 0.0
    %83 = vmatpush1.msra.mxu0 0.0
    %84 = vmatprep.subr.mxu0 0.0
    %85 = vmatpush1.msra.mxu0 0.0
    %86 = vmatprep.subr.mxu0 0.0
    %87 = vmatpush1.msra.mxu0 0.0
    %88 = vmatprep.subr.mxu0 0.0
    %89 = vmatpush1.msra.mxu0 0.0
    %90 = vmatprep.subr.mxu0 0.0
    %91 = vmatpush1.msra.mxu0 0.0
    %92 = vmatprep.subr.mxu0 0.0
    %93 = vmatpush1.msra.mxu0 0.0
    %94 = vmatprep.subr.mxu0 0.0
    %95 = vmatpush1.msra.mxu0 0.0
    %96 = vmatprep.subr.mxu0 0.0
    %97 = vmatpush1.msra.mxu0 0.0
    %98 = vmatprep.subr.mxu0 0.0
    %99 = vmatpush1.msra.mxu0 0.0
    %100 = vmatprep.subr.mxu0 0.0
    %101 = vmatpush1.msra.mxu0 0.0
    %102 = vmatprep.subr.mxu0 0.0
    %103 = vmatpush1.msra.mxu0 0.0
    %104 = vmatprep.subr.mxu0 0.0
    %105 = vmatpush1.msra.mxu0 0.0
    %106 = vmatprep.subr.mxu0 0.0
    %107 = vmatpush1.msra.mxu0 0.0
    %108 = vmatprep.subr.mxu0 0.0
    %109 = vmatpush1.msra.mxu0 0.0
    %110 = vmatprep.subr.mxu0 0.0
    %111 = vmatpush1.msra.mxu0 0.0
    %112 = vmatprep.subr.mxu0 0.0
    %113 = vmatpush1.msra.mxu0 0.0
    %114 = vmatprep.subr.mxu0 0.0
    %115 = vmatpush1.msra.mxu0 0.0
    %116 = vmatprep.subr.mxu0 0.0
    %117 = vmatpush1.msra.mxu0 0.0
    %118 = vmatprep.subr.mxu0 0.0
    %119 = vmatpush1.msra.mxu0 0.0
    %120 = vmatprep.subr.mxu0 0.0
    %121 = vmatpush1.msra.mxu0 0.0
    %122 = vmatprep.subr.mxu0 0.0
    %123 = vmatpush1.msra.mxu0 0.0
    %124 = vmatprep.subr.mxu0 0.0
    %125 = vmatpush1.msra.mxu0 0.0
    %126 = vmatprep.subr.mxu0 0.0
    %127 = vmatpush1.msra.mxu0 0.0
    %128 = vmatprep.subr.mxu0 0.0
    %129 = vmatpush1.msra.mxu0 0.0
    %130 = vmatprep.subr.mxu0 0.0
    %131 = vmatpush1.msra.mxu0 0.0
    %132 = vmatprep.subr.mxu0 0.0
    %133 = vmatpush1.msra.mxu0 0.0
    %134 = vmatprep.subr.mxu0 0.0
    %135 = vmatpush1.msra.mxu0 0.0
    %136 = vmatprep.subr.mxu0 0.0
    %137 = vmatpush1.msra.mxu0 0.0
    %138 = vmatprep.mubr.f32.mxu0 0.0
    %139 = vmatmul.mubr.f32.gmra.mrb[0].mxu0 %v72
    %v140 = vpop.f32.mrb[0].mxu0
    %v141 = vadd.f32 0.0, %v140
    %v142 = vpop.f32.mrb[0].mxu0
    %143 = vdwg.mxu0
    %vm144 = vcmask 130048
    %v146 = vsel %vm144, %v65, 0
    %148 = vmatprep.subr.mxu0 0.0
    %149 = vmatpush1.msra.mxu0 %v66
    %150 = vmatprep.subr.mxu0 0.0
    %151 = vmatpush1.msra.mxu0 %v67
    %152 = vmatprep.subr.mxu0 0.0
    %153 = vmatpush1.msra.mxu0 0.0
    %154 = vmatprep.subr.mxu0 0.0
    %155 = vmatpush1.msra.mxu0 0.0
    %156 = vmatprep.subr.mxu0 0.0
    %157 = vmatpush1.msra.mxu0 0.0
    %158 = vmatprep.subr.mxu0 0.0
    %159 = vmatpush1.msra.mxu0 0.0
    %160 = vmatprep.subr.mxu0 0.0
    %161 = vmatpush1.msra.mxu0 0.0
    %162 = vmatprep.subr.mxu0 0.0
    %163 = vmatpush1.msra.mxu0 0.0
    %164 = vmatprep.subr.mxu0 0.0
    %165 = vmatpush1.msra.mxu0 0.0
    %166 = vmatprep.subr.mxu0 0.0
    %167 = vmatpush1.msra.mxu0 0.0
    %168 = vmatprep.subr.mxu0 0.0
    %169 = vmatpush1.msra.mxu0 0.0
    %170 = vmatprep.subr.mxu0 0.0
    %171 = vmatpush1.msra.mxu0 0.0
    %172 = vmatprep.subr.mxu0 0.0
    %173 = vmatpush1.msra.mxu0 0.0
    %174 = vmatprep.subr.mxu0 0.0
    %175 = vmatpush1.msra.mxu0 0.0
    %176 = vmatprep.subr.mxu0 0.0
    %177 = vmatpush1.msra.mxu0 0.0
    %178 = vmatprep.subr.mxu0 0.0
    %179 = vmatpush1.msra.mxu0 0.0
    %180 = vmatprep.subr.mxu0 0.0
    %181 = vmatpush1.msra.mxu0 0.0
    %182 = vmatprep.subr.mxu0 0.0
    %183 = vmatpush1.msra.mxu0 0.0
    %184 = vmatprep.subr.mxu0 0.0
    %185 = vmatpush1.msra.mxu0 0.0
    %186 = vmatprep.subr.mxu0 0.0
    %187 = vmatpush1.msra.mxu0 0.0
    %188 = vmatprep.subr.mxu0 0.0
    %189 = vmatpush1.msra.mxu0 0.0
    %190 = vmatprep.subr.mxu0 0.0
    %191 = vmatpush1.msra.mxu0 0.0
    %192 = vmatprep.subr.mxu0 0.0
    %193 = vmatpush1.msra.mxu0 0.0
    %194 = vmatprep.subr.mxu0 0.0
    %195 = vmatpush1.msra.mxu0 0.0
    %196 = vmatprep.subr.mxu0 0.0
    %197 = vmatpush1.msra.mxu0 0.0
    %198 = vmatprep.subr.mxu0 0.0
    %199 = vmatpush1.msra.mxu0 0.0
    %200 = vmatprep.subr.mxu0 0.0
    %201 = vmatpush1.msra.mxu0 0.0
    %202 = vmatprep.subr.mxu0 0.0
    %203 = vmatpush1.msra.mxu0 0.0
    %204 = vmatprep.subr.mxu0 0.0
    %205 = vmatpush1.msra.mxu0 0.0
    %206 = vmatprep.subr.mxu0 0.0
    %207 = vmatpush1.msra.mxu0 0.0
    %208 = vmatprep.subr.mxu0 0.0
    %209 = vmatpush1.msra.mxu0 0.0
    %210 = vmatprep.subr.mxu0 0.0
    %211 = vmatpush1.msra.mxu0 0.0
    %212 = vmatprep.mubr.f32.mxu0 0.0
    %213 = vmatmul.mubr.f32.gmra.mrb[0].mxu0 %v146
    %v214 = vpop.f32.mrb[0].mxu0
    %v215 = vadd.f32 %v141, %v214
    %v216 = vpop.f32.mrb[0].mxu0
    %217 = vdwg.mxu0
    %v218 = vld [vmem:[%s4] sm:$0x1]
    %v220 = vlaneseq
    %v221 = vshrl.u32 %v220, 7
    %v222 = vsub.s32 0, %v221
    %v223 = vrot.slane %v218, %v222
    %v225 = vadd.f32 %v215, %v223
    %v226 = vmax.f32 %v225, 0.0
    %v227 = vld [vmem:[%s5] sm:$0x1]
    %s228 = sld [smem:[#allocation2]]
    %v229 = vstv %s228
    %vm230 = vcmask 261120
    %v232 = vsel %vm230, %v227, 0
    %v235 = vsel %vm230, %v226, 0
    %237 = vmatprep.subr.mxu0 0.0
    %238 = vmatpush1.xpose.msra.mxu0 %v235
    %239 = vmatprep.subr.mxu0 0.0
    %240 = vmatpush1.xpose.msra.mxu0 0.0
    %241 = vmatprep.subr.mxu0 0.0
    %242 = vmatpush1.xpose.msra.mxu0 0.0
    %243 = vmatprep.subr.mxu0 0.0
    %244 = vmatpush1.xpose.msra.mxu0 0.0
    %245 = vmatprep.subr.mxu0 0.0
    %246 = vmatpush1.xpose.msra.mxu0 0.0
    %247 = vmatprep.subr.mxu0 0.0
    %248 = vmatpush1.xpose.msra.mxu0 0.0
    %249 = vmatprep.subr.mxu0 0.0
    %250 = vmatpush1.xpose.msra.mxu0 0.0
    %251 = vmatprep.subr.mxu0 0.0
    %252 = vmatpush1.xpose.msra.mxu0 0.0
    %253 = vmatprep.subr.mxu0 0.0
    %254 = vmatpush1.xpose.msra.mxu0 0.0
    %255 = vmatprep.subr.mxu0 0.0
    %256 = vmatpush1.xpose.msra.mxu0 0.0
    %257 = vmatprep.subr.mxu0 0.0
    %258 = vmatpush1.xpose.msra.mxu0 0.0
    %259 = vmatprep.subr.mxu0 0.0
    %260 = vmatpush1.xpose.msra.mxu0 0.0
    %261 = vmatprep.subr.mxu0 0.0
    %262 = vmatpush1.xpose.msra.mxu0 0.0
    %263 = vmatprep.subr.mxu0 0.0
    %264 = vmatpush1.xpose.msra.mxu0 0.0
    %265 = vmatprep.subr.mxu0 0.0
    %266 = vmatpush1.xpose.msra.mxu0 0.0
    %267 = vmatprep.subr.mxu0 0.0
    %268 = vmatpush1.xpose.msra.mxu0 0.0
    %269 = vmatprep.subr.mxu0 0.0
    %270 = vmatpush1.xpose.msra.mxu0 0.0
    %271 = vmatprep.subr.mxu0 0.0
    %272 = vmatpush1.xpose.msra.mxu0 0.0
    %273 = vmatprep.subr.mxu0 0.0
    %274 = vmatpush1.xpose.msra.mxu0 0.0
    %275 = vmatprep.subr.mxu0 0.0
    %276 = vmatpush1.xpose.msra.mxu0 0.0
    %277 = vmatprep.subr.mxu0 0.0
    %278 = vmatpush1.xpose.msra.mxu0 0.0
    %279 = vmatprep.subr.mxu0 0.0
    %280 = vmatpush1.xpose.msra.mxu0 0.0
    %281 = vmatprep.subr.mxu0 0.0
    %282 = vmatpush1.xpose.msra.mxu0 0.0
    %283 = vmatprep.subr.mxu0 0.0
    %284 = vmatpush1.xpose.msra.mxu0 0.0
    %285 = vmatprep.subr.mxu0 0.0
    %286 = vmatpush1.xpose.msra.mxu0 0.0
    %287 = vmatprep.subr.mxu0 0.0
    %288 = vmatpush1.xpose.msra.mxu0 0.0
    %289 = vmatprep.subr.mxu0 0.0
    %290 = vmatpush1.xpose.msra.mxu0 0.0
    %291 = vmatprep.subr.mxu0 0.0
    %292 = vmatpush1.xpose.msra.mxu0 0.0
    %293 = vmatprep.subr.mxu0 0.0
    %294 = vmatpush1.xpose.msra.mxu0 0.0
    %295 = vmatprep.subr.mxu0 0.0
    %296 = vmatpush1.xpose.msra.mxu0 0.0
    %297 = vmatprep.subr.mxu0 0.0
    %298 = vmatpush1.xpose.msra.mxu0 0.0
    %299 = vmatprep.subr.mxu0 0.0
    %300 = vmatpush1.xpose.msra.mxu0 0.0
    %301 = vmatprep.mubr.f32.mxu0 0.0
    %302 = vmatmul.mubr.f32.gmra.mrb[0].mxu0 %v232
    %v303 = vpop.f32.mrb[0].mxu0
    %v304 = vadd.f32 %v229, %v303
    %v305 = vpop.f32.mrb[0].mxu0
    %306 = vdwg.mxu0
    %vm307 = vcmask 57344
    %308 = vst.msk [vmem:[#allocation9] sm:$0x1] %vm307, %v304
    // Predicated region
    $region42: #{tpu_custom_call.1} parent=1 // pred_check
      _
    $region43: #{tpu_custom_call.1} parent=1 // pred_check_branch
      %310 = sbr.rel (0) target = $region45
    $region44: #{tpu_custom_call.1} parent=1 // pred_region
      %s312 = ssub.s32 16, 16
      %313 = vsyncadd [#allocation5], %s312
      %s315 = sshll.u32 [#allocation9], 4
      %s316 = int_to_ptr.vmem [resolvable:$true] %s315
      %318 = dma.vmem_to_hbm [thread:$0]  %s316, 16, %s7, [#allocation5]
    $region45: #{tpu_custom_call.1} parent=1 // pred_fallthru
      _
    // Predicated region
    $region46: #{tpu_custom_call.1} parent=1 // pred_check
      _
    $region47: #{tpu_custom_call.1} parent=1 // pred_check_branch
      %320 = sbr.rel (0) target = $region49
    $region48: #{tpu_custom_call.1} parent=1 // pred_region
      %321 = dma.done [#allocation5], 16
    $region49: #{tpu_custom_call.1} parent=1 // pred_fallthru
      _
    %322 = vsyncpa [#allocation4], 1
    %323 = vsyncpa [#allocation7], 1
    %324 = vsyncpa [#allocation5], 1

</llo_original>
